<compile_context>
chip_gen: v6e
topology: v6e:2x2x1
jax: 0.10.0
libtpu: 0.0.40
codegen_flags: <defaults>
</compile_context>

<pallas_src>
import functools
import sys

import jax
import jax.numpy as jnp
from jax.experimental import pallas as pl
from jax.experimental.pallas import tpu as pltpu

EPS = sys.float_info.epsilon  # 2.220446049250313e-16
LANES = 128
SUBLANES = 8


# ------------------------- MLP forward (the module) -------------------------

def _softplus(x):
    # PyTorch Softplus (beta=1, threshold=20): x if x > 20 else log1p(exp(x)).
    return jnp.where(x > 20.0, x, jnp.log1p(jnp.exp(jnp.minimum(x, 20.0))))


def _mlp_kernel(*args, n_layers):
    # args = (x_ref, w0, b0, w1, b1, ..., w_{L-1}, b_{L-1}, out_ref)
    x_ref = args[0]
    out_ref = args[-1]
    wb = args[1:-1]
    h = x_ref[...].astype(jnp.float32)
    for li in range(n_layers):
        w = wb[2 * li][...].astype(jnp.float32)
        b = wb[2 * li + 1][...].astype(jnp.float32)
        h = jnp.dot(h, w, preferred_element_type=jnp.float32) + b
        if li < n_layers - 1:  # Softplus after every hidden Linear, not the last
            h = _softplus(h)
    out_ref[...] = h.astype(out_ref.dtype)


def nn_regression_forward(x, weights, biases, *, max_row_tile=1024):
    """Fused forward pass of NNRegressionModel. x: (B, input_node_size)."""
    assert len(weights) == len(biases) and len(weights) >= 1
    B, in_dim = x.shape
    out_dim = weights[-1].shape[1]
    n_layers = len(weights)

    # Batch tile: multiple of 8 sublanes, as large as reasonable.
    tb = min(max_row_tile, ((B + SUBLANES - 1) // SUBLANES) * SUBLANES)
    b_pad = ((B + tb - 1) // tb) * tb
    if b_pad != B:
        x = jnp.pad(x, ((0, b_pad - B), (0, 0)))
    grid = (b_pad // tb,)

    in_specs = [pl.BlockSpec((tb, in_dim), lambda i: (i, 0))]
    args = [x]
    for w, b in zip(weights, biases):
        d_in, d_out = w.shape
        in_specs.append(pl.BlockSpec((d_in, d_out), lambda i: (0, 0)))
        in_specs.append(pl.BlockSpec((1, d_out), lambda i: (0, 0)))
        args.append(w)
        args.append(b.reshape(1, d_out))

    out = pl.pallas_call(
        functools.partial(_mlp_kernel, n_layers=n_layers),
        out_shape=jax.ShapeDtypeStruct((b_pad, out_dim), x.dtype),
        grid=grid,
        in_specs=in_specs,
        out_specs=pl.BlockSpec((tb, out_dim), lambda i: (i, 0)),
        compiler_params=pltpu.CompilerParams(
            dimension_semantics=("parallel",)
        ),
    )(*args)
    return out[:B]


# ----------------------------- RMSE loss kernel ------------------------------

def _rmse_partial_kernel(yhat_ref, y_ref, out_ref, acc_ref):
    """Per-split partial sum of squared diffs; (8,128) VMEM vector accumulator."""
    i = pl.program_id(1)

    @pl.when(i == 0)
    def _():
        acc_ref[...] = jnp.zeros_like(acc_ref)

    d = yhat_ref[...].astype(jnp.float32) - y_ref[...].astype(jnp.float32)
    dsq = d * d
    # Fold the row tile into the (8,128) vreg shape: VPU adds only, no XLU.
    acc_ref[...] += jnp.sum(dsq.reshape(-1, SUBLANES, LANES), axis=0)

    @pl.when(i == pl.num_programs(1) - 1)
    def _():
        # Single cross-lane/sublane reduce per split.
        out_ref[0, 0] = jnp.sum(acc_ref[...])


def rmse_loss(yhat: jax.Array, y: jax.Array, *, splits=2, max_tile_groups=256):
    """RMSE: sqrt(mean((yhat - y)^2) + eps). Returns a scalar float32."""
    assert yhat.shape == y.shape, "yhat and y must have the same shape"
    n = yhat.size
    assert n > 0, "rmse_loss: empty input"

    # Keep the original dtype (kernel upcasts to f32) — no wrapper-side astype.
    yhat_f = jnp.ravel(yhat)
    y_f = jnp.ravel(y)

    group = SUBLANES * LANES                      # 1024 elems = one (8,128) tile
    m8 = pl.cdiv(n, group)                        # number of (8,128) groups
    inner = max(1, pl.cdiv(m8, splits * max_tile_groups))  # steps per split
    rtg = max(1, pl.cdiv(m8, splits * inner))     # groups per tile (<= 256)
    padded_groups = splits * inner * rtg
    row_tile = SUBLANES * rtg                     # <= 2048 rows ~ 1 MiB f32 block

    pad = padded_groups * group - n
    if pad:
        # TODO(synk): for very large ragged inputs, mask the tail in-kernel
        # (broadcasted_iota vs n) instead of materializing a padded HBM copy.
        yhat_f = jnp.pad(yhat_f, (0, pad))
        y_f = jnp.pad(y_f, (0, pad))
    m = padded_groups * SUBLANES
    yhat2 = yhat_f.reshape(m, LANES)
    y2 = y_f.reshape(m, LANES)

    partial = pl.pallas_call(
        _rmse_partial_kernel,
        out_shape=jax.ShapeDtypeStruct((splits, 1), jnp.float32),
        grid=(splits, inner),
        in_specs=[
            pl.BlockSpec((row_tile, LANES),
                         lambda c, i, inner=inner: (c * inner + i, 0)),
            pl.BlockSpec((row_tile, LANES),
                         lambda c, i, inner=inner: (c * inner + i, 0)),
        ],
        out_specs=pl.BlockSpec((1, 1), lambda c, i: (c, 0),
                               memory_space=pltpu.SMEM),
        scratch_shapes=[pltpu.VMEM((SUBLANES, LANES), jnp.float32)],
        compiler_params=pltpu.CompilerParams(
            dimension_semantics=("parallel", "arbitrary"),
        ),
    )(yhat2, y2)

    # n is a trace-time Python int: multiply by constant reciprocal, add eps.
    return jnp.sqrt(jnp.sum(partial) * jnp.float32(1.0 / n) + jnp.float32(EPS))


# ------------------------------------ main -----------------------------------

if __name__ == "__main__":
    key = jax.random.PRNGKey(0)
    config = dict(input_node_size=16, output_node_size=1,
                  hidden_layer_width=32, model_depth=3)
    batch = 8

    dims = ([config["input_node_size"]]
            + [config["hidden_layer_width"]] * config["model_depth"]
            + [config["output_node_size"]])

    keys = jax.random.split(key, 2 * (len(dims) - 1) + 2)
    weights, biases = [], []
    ki = 0
    for d_in, d_out in zip(dims[:-1], dims[1:]):
        bound = 1.0 / (d_in ** 0.5)
        weights.append(jax.random.uniform(keys[ki], (d_in, d_out),
                                          minval=-bound, maxval=bound,
                                          dtype=jnp.float32)); ki += 1
        biases.append(jax.random.uniform(keys[ki], (d_out,),
                                         minval=-bound, maxval=bound,
                                         dtype=jnp.float32)); ki += 1

    x = jax.random.normal(keys[ki], (batch, config["input_node_size"]),
                          dtype=jnp.float32); ki += 1
    y_true = jax.random.normal(keys[ki], (batch, config["output_node_size"]),
                               dtype=jnp.float32); ki += 1

    pred = nn_regression_forward(x, weights, biases)
    loss = rmse_loss(pred, y_true)
    jax.block_until_ready((pred, loss))

    # Pure-JAX references.
    h = x
    for li, (w, b) in enumerate(zip(weights, biases)):
        h = h @ w + b
        if li < len(weights) - 1:
            h = jnp.where(h > 20.0, h, jnp.log1p(jnp.exp(jnp.minimum(h, 20.0))))
    pred_ref = h
    loss_ref = jnp.sqrt(jnp.mean((pred - y_true) ** 2) + jnp.float32(EPS))

    assert jnp.allclose(pred, pred_ref, rtol=1e-4, atol=1e-4), (pred, pred_ref)
    assert jnp.allclose(loss, loss_ref, rtol=1e-5, atol=1e-5), (loss, loss_ref)

    print("KERNEL_OK")
</pallas_src>

<mosaic_0001>
module attributes {stable_mosaic.version = 11 : i64} {
  func.func @_mlp_kernel(%arg0: i32, %arg1: memref<8x16xf32, #tpu.memory_space<vmem>>, %arg2: memref<16x32xf32, #tpu.memory_space<vmem>>, %arg3: memref<1x32xf32, #tpu.memory_space<vmem>>, %arg4: memref<32x32xf32, #tpu.memory_space<vmem>>, %arg5: memref<1x32xf32, #tpu.memory_space<vmem>>, %arg6: memref<32x32xf32, #tpu.memory_space<vmem>>, %arg7: memref<1x32xf32, #tpu.memory_space<vmem>>, %arg8: memref<32x1xf32, #tpu.memory_space<vmem>>, %arg9: memref<1x1xf32, #tpu.memory_space<vmem>>, %arg10: memref<8x1xf32, #tpu.memory_space<vmem>>) attributes {dimension_semantics = [#tpu.dimension_semantics<parallel>], iteration_bounds = array<i64: 1>, scalar_prefetch = 0 : i64, scratch_operands = 0 : i64, tpu.core_type = #tpu.core_type<tc>, window_params = [{transform_indices = @transform_0, window_bounds = array<i64: 8, 16>}, {pipeline_mode = #tpu.pipeline_mode<synchronous>, transform_indices = @transform_1, window_bounds = array<i64: 16, 32>}, {pipeline_mode = #tpu.pipeline_mode<synchronous>, transform_indices = @transform_2, window_bounds = array<i64: 1, 32>}, {pipeline_mode = #tpu.pipeline_mode<synchronous>, transform_indices = @transform_3, window_bounds = array<i64: 32, 32>}, {pipeline_mode = #tpu.pipeline_mode<synchronous>, transform_indices = @transform_4, window_bounds = array<i64: 1, 32>}, {pipeline_mode = #tpu.pipeline_mode<synchronous>, transform_indices = @transform_5, window_bounds = array<i64: 32, 32>}, {pipeline_mode = #tpu.pipeline_mode<synchronous>, transform_indices = @transform_6, window_bounds = array<i64: 1, 32>}, {pipeline_mode = #tpu.pipeline_mode<synchronous>, transform_indices = @transform_7, window_bounds = array<i64: 32, 1>}, {pipeline_mode = #tpu.pipeline_mode<synchronous>, transform_indices = @transform_8, window_bounds = array<i64: 1, 1>}, {transform_indices = @transform_9, window_bounds = array<i64: 8, 1>}]} {
    %c0 = arith.constant 0 : index
    %c0_0 = arith.constant 0 : index
    %0 = vector.load %arg1[%c0, %c0_0] : memref<8x16xf32, #tpu.memory_space<vmem>>, vector<8x16xf32>
    %c0_1 = arith.constant 0 : index
    %c0_2 = arith.constant 0 : index
    %1 = vector.load %arg2[%c0_1, %c0_2] : memref<16x32xf32, #tpu.memory_space<vmem>>, vector<16x32xf32>
    %c0_3 = arith.constant 0 : index
    %c0_4 = arith.constant 0 : index
    %2 = vector.load %arg3[%c0_3, %c0_4] : memref<1x32xf32, #tpu.memory_space<vmem>>, vector<1x32xf32>
    %cst = arith.constant dense<0.000000e+00> : vector<8x32xf32>
    %3 = tpu.matmul %0, %1, %cst {dimension_numbers = #tpu.dot_dimension_numbers<[1], [0], [0], [1], [0, 0, 1, 1], [], []>} : vector<8x16xf32>, vector<16x32xf32>, vector<8x32xf32> -> vector<8x32xf32>
    %4 = vector.broadcast %2 : vector<1x32xf32> to vector<8x32xf32>
    %5 = arith.addf %3, %4 : vector<8x32xf32>
    %cst_5 = arith.constant 2.000000e+01 : f32
    %6 = vector.broadcast %cst_5 : f32 to vector<8x32xf32>
    %7 = arith.cmpf ogt, %5, %6 : vector<8x32xf32>
    %cst_6 = arith.constant 2.000000e+01 : f32
    %8 = vector.broadcast %cst_6 : f32 to vector<8x32xf32>
    %9 = arith.minimumf %5, %8 : vector<8x32xf32>
    %10 = math.exp %9 : vector<8x32xf32>
    %11 = math.log1p %10 : vector<8x32xf32>
    %12 = arith.select %7, %5, %11 : vector<8x32xi1>, vector<8x32xf32>
    %c0_7 = arith.constant 0 : index
    %c0_8 = arith.constant 0 : index
    %13 = vector.load %arg4[%c0_7, %c0_8] : memref<32x32xf32, #tpu.memory_space<vmem>>, vector<32x32xf32>
    %c0_9 = arith.constant 0 : index
    %c0_10 = arith.constant 0 : index
    %14 = vector.load %arg5[%c0_9, %c0_10] : memref<1x32xf32, #tpu.memory_space<vmem>>, vector<1x32xf32>
    %cst_11 = arith.constant dense<0.000000e+00> : vector<8x32xf32>
    %15 = tpu.matmul %12, %13, %cst_11 {dimension_numbers = #tpu.dot_dimension_numbers<[1], [0], [0], [1], [0, 0, 1, 1], [], []>} : vector<8x32xf32>, vector<32x32xf32>, vector<8x32xf32> -> vector<8x32xf32>
    %16 = vector.broadcast %14 : vector<1x32xf32> to vector<8x32xf32>
    %17 = arith.addf %15, %16 : vector<8x32xf32>
    %cst_12 = arith.constant 2.000000e+01 : f32
    %18 = vector.broadcast %cst_12 : f32 to vector<8x32xf32>
    %19 = arith.cmpf ogt, %17, %18 : vector<8x32xf32>
    %cst_13 = arith.constant 2.000000e+01 : f32
    %20 = vector.broadcast %cst_13 : f32 to vector<8x32xf32>
    %21 = arith.minimumf %17, %20 : vector<8x32xf32>
    %22 = math.exp %21 : vector<8x32xf32>
    %23 = math.log1p %22 : vector<8x32xf32>
    %24 = arith.select %19, %17, %23 : vector<8x32xi1>, vector<8x32xf32>
    %c0_14 = arith.constant 0 : index
    %c0_15 = arith.constant 0 : index
    %25 = vector.load %arg6[%c0_14, %c0_15] : memref<32x32xf32, #tpu.memory_space<vmem>>, vector<32x32xf32>
    %c0_16 = arith.constant 0 : index
    %c0_17 = arith.constant 0 : index
    %26 = vector.load %arg7[%c0_16, %c0_17] : memref<1x32xf32, #tpu.memory_space<vmem>>, vector<1x32xf32>
    %cst_18 = arith.constant dense<0.000000e+00> : vector<8x32xf32>
    %27 = tpu.matmul %24, %25, %cst_18 {dimension_numbers = #tpu.dot_dimension_numbers<[1], [0], [0], [1], [0, 0, 1, 1], [], []>} : vector<8x32xf32>, vector<32x32xf32>, vector<8x32xf32> -> vector<8x32xf32>
    %28 = vector.broadcast %26 : vector<1x32xf32> to vector<8x32xf32>
    %29 = arith.addf %27, %28 : vector<8x32xf32>
    %cst_19 = arith.constant 2.000000e+01 : f32
    %30 = vector.broadcast %cst_19 : f32 to vector<8x32xf32>
    %31 = arith.cmpf ogt, %29, %30 : vector<8x32xf32>
    %cst_20 = arith.constant 2.000000e+01 : f32
    %32 = vector.broadcast %cst_20 : f32 to vector<8x32xf32>
    %33 = arith.minimumf %29, %32 : vector<8x32xf32>
    %34 = math.exp %33 : vector<8x32xf32>
    %35 = math.log1p %34 : vector<8x32xf32>
    %36 = arith.select %31, %29, %35 : vector<8x32xi1>, vector<8x32xf32>
    %c0_21 = arith.constant 0 : index
    %c0_22 = arith.constant 0 : index
    %37 = vector.load %arg8[%c0_21, %c0_22] : memref<32x1xf32, #tpu.memory_space<vmem>>, vector<32x1xf32>
    %c0_23 = arith.constant 0 : index
    %c0_24 = arith.constant 0 : index
    %38 = vector.load %arg9[%c0_23, %c0_24] : memref<1x1xf32, #tpu.memory_space<vmem>>, vector<1x1xf32>
    %cst_25 = arith.constant dense<0.000000e+00> : vector<8x1xf32>
    %39 = tpu.matmul %36, %37, %cst_25 {dimension_numbers = #tpu.dot_dimension_numbers<[1], [0], [0], [1], [0, 0, 1, 1], [], []>} : vector<8x32xf32>, vector<32x1xf32>, vector<8x1xf32> -> vector<8x1xf32>
    %40 = vector.broadcast %38 : vector<1x1xf32> to vector<8x1xf32>
    %41 = arith.addf %39, %40 : vector<8x1xf32>
    %c0_26 = arith.constant 0 : index
    %c0_27 = arith.constant 0 : index
    %42 = vector.load %arg10[%c0_26, %c0_27] : memref<8x1xf32, #tpu.memory_space<vmem>>, vector<8x1xf32>
    tpu.vector_store %arg10[%c0_26, %c0_27], %41 {strides = array<i32>} : memref<8x1xf32, #tpu.memory_space<vmem>>, vector<8x1xf32>,
    return
  }
  func.func @transform_0(%arg0: i32) -> (i32, i32) {
    %c0_i32 = arith.constant 0 : i32
    %c0_i32_0 = arith.constant 0 : i32
    return %arg0, %c0_i32 : i32, i32
  }
  func.func @transform_1(%arg0: i32) -> (i32, i32) {
    %c0_i32 = arith.constant 0 : i32
    %c0_i32_0 = arith.constant 0 : i32
    %c0_i32_1 = arith.constant 0 : i32
    return %c0_i32, %c0_i32_0 : i32, i32
  }
  func.func @transform_2(%arg0: i32) -> (i32, i32) {
    %c0_i32 = arith.constant 0 : i32
    %c0_i32_0 = arith.constant 0 : i32
    %c0_i32_1 = arith.constant 0 : i32
    return %c0_i32, %c0_i32_0 : i32, i32
  }
  func.func @transform_3(%arg0: i32) -> (i32, i32) {
    %c0_i32 = arith.constant 0 : i32
    %c0_i32_0 = arith.constant 0 : i32
    %c0_i32_1 = arith.constant 0 : i32
    return %c0_i32, %c0_i32_0 : i32, i32
  }
  func.func @transform_4(%arg0: i32) -> (i32, i32) {
    %c0_i32 = arith.constant 0 : i32
    %c0_i32_0 = arith.constant 0 : i32
    %c0_i32_1 = arith.constant 0 : i32
    return %c0_i32, %c0_i32_0 : i32, i32
  }
  func.func @transform_5(%arg0: i32) -> (i32, i32) {
    %c0_i32 = arith.constant 0 : i32
    %c0_i32_0 = arith.constant 0 : i32
    %c0_i32_1 = arith.constant 0 : i32
    return %c0_i32, %c0_i32_0 : i32, i32
  }
  func.func @transform_6(%arg0: i32) -> (i32, i32) {
    %c0_i32 = arith.constant 0 : i32
    %c0_i32_0 = arith.constant 0 : i32
    %c0_i32_1 = arith.constant 0 : i32
    return %c0_i32, %c0_i32_0 : i32, i32
  }
  func.func @transform_7(%arg0: i32) -> (i32, i32) {
    %c0_i32 = arith.constant 0 : i32
    %c0_i32_0 = arith.constant 0 : i32
    %c0_i32_1 = arith.constant 0 : i32
    return %c0_i32, %c0_i32_0 : i32, i32
  }
  func.func @transform_8(%arg0: i32) -> (i32, i32) {
    %c0_i32 = arith.constant 0 : i32
    %c0_i32_0 = arith.constant 0 : i32
    %c0_i32_1 = arith.constant 0 : i32
    return %c0_i32, %c0_i32_0 : i32, i32
  }
  func.func @transform_9(%arg0: i32) -> (i32, i32) {
    %c0_i32 = arith.constant 0 : i32
    %c0_i32_0 = arith.constant 0 : i32
    return %arg0, %c0_i32 : i32, i32
  }
}

</mosaic_0001>

<llo_original>
// kernel: tpu_custom_call.1
$region0: #{tpu_custom_call.1}
  #allocation0 [shape = 'u32[]', space=smem, size = 0x4, offset = 0x4, fixed_abs, tag = 'smem constant byte address 0x4 - core index']
  #allocation1 [shape = 'u32[144,128]{1,0:T(1,128)}', space=vmem, size = 0x12000, scoped, tag = 'internal scratch']
  #allocation2 [shape = 'f32[1,1]{1,0:T(1,128)S(1)}', space=vmem, size = 0x200, scoped, tag = 'scoped memory for tpu_custom_call.1']
  %s0 = inlined_call_operand.vmem [shape: f32[8,16], index: 0, kind: input, shape index: {}]
  %s1 = inlined_call_operand.hbm [shape: f32[16,32], index: 1, kind: input, shape index: {}]
  %s2 = inlined_call_operand.hbm [shape: f32[1,32], index: 2, kind: input, shape index: {}]
  %s3 = inlined_call_operand.vmem [shape: f32[32,32], index: 3, kind: input, shape index: {}]
  %s4 = inlined_call_operand.vmem [shape: f32[1,32], index: 4, kind: input, shape index: {}]
  %s5 = inlined_call_operand.hbm [shape: f32[32,32], index: 5, kind: input, shape index: {}]
  %s6 = inlined_call_operand.vmem [shape: f32[1,32], index: 6, kind: input, shape index: {}]
  %s7 = inlined_call_operand.vmem [shape: f32[32,1], index: 7, kind: input, shape index: {}]
  %s8 = inlined_call_operand.<no memory space> [shape: f32[1,1], index: 8, kind: input, shape index: {}]
  %s9 = inlined_call_operand.vmem [shape: f32[8,1], index: 9, kind: output, shape index: {}]
  %s10 = sld [smem:[#allocation0]]
  $region58: #{tpu_custom_call.1} parent=0
    _
  %s12 = ssub.s32 1, %s10
  %s13 = scalar_select 0, %s12, %s10
  %v14 = vstv %s8
  %15 = vst [vmem:[#allocation2] sm:$0x1] %v14
  $region1: #{tpu_custom_call.1} parent=0
    #allocation3 [shape = 'u8[8192]{0}', space=vmem, size = 0x2000, scoped, tag = 'input window, operand 1, single buffered']
    #allocation4 [shape = 's32[1]{0}', space=sflag, size = 0x4, scoped, tag = 'scoped memory for tpu_custom_call.1']
    #allocation5 [shape = 'u8[512]{0}', space=vmem, size = 0x400, scoped, tag = 'input window, operand 2, single buffered']
    #allocation6 [shape = 's32[1]{0}', space=sflag, size = 0x4, scoped, tag = 'scoped memory for tpu_custom_call.1']
    #allocation7 [shape = 'u8[16384]{0}', space=vmem, size = 0x4000, scoped, tag = 'input window, operand 5, single buffered']
    %16 = vsyncpa [#allocation4], 0
    %17 = vsyncpa [#allocation6], 0
    // Predicated region
    $region2: #{tpu_custom_call.1} parent=1 // pred_check
      _
    $region3: #{tpu_custom_call.1} parent=1 // pred_check_branch
      %19 = sbr.rel (0) target = $region5
    $region4: #{tpu_custom_call.1} parent=1 // pred_region
      _
    $region5: #{tpu_custom_call.1} parent=1 // pred_fallthru
      _
    // Predicated region
    $region6: #{tpu_custom_call.1} parent=1 // pred_check
      _
    $region7: #{tpu_custom_call.1} parent=1 // pred_check_branch
      %21 = sbr.rel (0) target = $region9
    $region8: #{tpu_custom_call.1} parent=1 // pred_region
      %s23 = ssub.s32 256, 256
      %24 = vsyncadd [#allocation4], %s23
      %s25 = sshll.u32 [#allocation3], 4
      %s26 = int_to_ptr.vmem [resolvable:$true] %s25
      %31 = dma.hbm_to_vmem [thread:$0]  %s1, 256, %s26, [#allocation4], 128, 128, 8
    $region9: #{tpu_custom_call.1} parent=1 // pred_fallthru
      _
    // Predicated region
    $region10: #{tpu_custom_call.1} parent=1 // pred_check
      _
    $region11: #{tpu_custom_call.1} parent=1 // pred_check_branch
      %33 = sbr.rel (0) target = $region13
    $region12: #{tpu_custom_call.1} parent=1 // pred_region
      %s35 = ssub.s32 16, 16
      %36 = vsyncadd [#allocation6], %s35
      %s38 = sshll.u32 [#allocation5], 4
      %s39 = int_to_ptr.vmem [resolvable:$true] %s38
      %41 = dma.hbm_to_vmem [thread:$0]  %s2, 16, %s39, [#allocation6]
    $region13: #{tpu_custom_call.1} parent=1 // pred_fallthru
      _
    // Predicated region
    $region14: #{tpu_custom_call.1} parent=1 // pred_check
      _
    $region15: #{tpu_custom_call.1} parent=1 // pred_check_branch
      %43 = sbr.rel (0) target = $region17
    $region16: #{tpu_custom_call.1} parent=1 // pred_region
      _
    $region17: #{tpu_custom_call.1} parent=1 // pred_fallthru
      _
    // Predicated region
    $region18: #{tpu_custom_call.1} parent=1 // pred_check
      _
    $region19: #{tpu_custom_call.1} parent=1 // pred_check_branch
      %45 = sbr.rel (0) target = $region21
    $region20: #{tpu_custom_call.1} parent=1 // pred_region
      _
    $region21: #{tpu_custom_call.1} parent=1 // pred_fallthru
      _
    // Predicated region
    $region22: #{tpu_custom_call.1} parent=1 // pred_check
      _
    $region23: #{tpu_custom_call.1} parent=1 // pred_check_branch
      %47 = sbr.rel (0) target = $region25
    $region24: #{tpu_custom_call.1} parent=1 // pred_region
      %s49 = ssub.s32 512, 512
      %50 = vsyncadd [#allocation6], %s49
      %s51 = sshll.u32 [#allocation7], 4
      %s52 = int_to_ptr.vmem [resolvable:$true] %s51
      %57 = dma.hbm_to_vmem [thread:$0]  %s5, 512, %s52, [#allocation6], 128, 128, 8
    $region25: #{tpu_custom_call.1} parent=1 // pred_fallthru
      _
    // Predicated region
    $region26: #{tpu_custom_call.1} parent=1 // pred_check
      _
    $region27: #{tpu_custom_call.1} parent=1 // pred_check_branch
      %59 = sbr.rel (0) target = $region29
    $region28: #{tpu_custom_call.1} parent=1 // pred_region
      _
    $region29: #{tpu_custom_call.1} parent=1 // pred_fallthru
      _
    // Predicated region
    $region30: #{tpu_custom_call.1} parent=1 // pred_check
      _
    $region31: #{tpu_custom_call.1} parent=1 // pred_check_branch
      %61 = sbr.rel (0) target = $region33
    $region32: #{tpu_custom_call.1} parent=1 // pred_region
      _
    $region33: #{tpu_custom_call.1} parent=1 // pred_fallthru
      _
    // Predicated region
    $region34: #{tpu_custom_call.1} parent=1 // pred_check
      _
    $region35: #{tpu_custom_call.1} parent=1 // pred_check_branch
      %63 = sbr.rel (0) target = $region37
    $region36: #{tpu_custom_call.1} parent=1 // pred_region
      _
    $region37: #{tpu_custom_call.1} parent=1 // pred_fallthru
      _
    // Predicated region
    $region38: #{tpu_custom_call.1} parent=1 // pred_check
      _
    $region39: #{tpu_custom_call.1} parent=1 // pred_check_branch
      %65 = sbr.rel (0) target = $region41
    $region40: #{tpu_custom_call.1} parent=1 // pred_region
      %66 = dma.done [#allocation4], 256
    $region41: #{tpu_custom_call.1} parent=1 // pred_fallthru
      _
    // Predicated region
    $region42: #{tpu_custom_call.1} parent=1 // pred_check
      _
    $region43: #{tpu_custom_call.1} parent=1 // pred_check_branch
      %68 = sbr.rel (0) target = $region45
    $region44: #{tpu_custom_call.1} parent=1 // pred_region
      %69 = dma.done [#allocation6], 16
    $region45: #{tpu_custom_call.1} parent=1 // pred_fallthru
      _
    // Predicated region
    $region46: #{tpu_custom_call.1} parent=1 // pred_check
      _
    $region47: #{tpu_custom_call.1} parent=1 // pred_check_branch
      %71 = sbr.rel (0) target = $region49
    $region48: #{tpu_custom_call.1} parent=1 // pred_region
      %72 = dma.done [#allocation6], 512
    $region49: #{tpu_custom_call.1} parent=1 // pred_fallthru
      _
    %v73 = vld [vmem:[%s0] sm:$0xff]
    %v74 = vld [vmem:[#allocation3] sm:$0xff]
    %v75 = vld [vmem:[#allocation3 + $0x8] sm:$0xff]
    %v76 = vld [vmem:[#allocation5] sm:$0x1]
    %v78 = vlaneseq
    %v79 = vshrl.u32 %v78, 7
    %v80 = vsub.s32 0, %v79
    %v81 = vrot.slane %v76, %v80
    %vm83 = vcmask 130048
    %v85 = vsel %vm83, %v73, 0
    %87 = vmatprep.subr.mxu0 0.0
    %88 = vmatpush1.msra.mxu0 0.0
    %89 = vmatprep.subr.mxu0 0.0
    %90 = vmatpush1.msra.mxu0 0.0
    %91 = vmatprep.subr.mxu0 0.0
    %92 = vmatpush1.msra.mxu0 0.0
    %93 = vmatprep.subr.mxu0 0.0
    %94 = vmatpush1.msra.mxu0 0.0
    %95 = vmatprep.subr.mxu0 0.0
    %96 = vmatpush1.msra.mxu0 0.0
    %97 = vmatprep.subr.mxu0 0.0
    %98 = vmatpush1.msra.mxu0 0.0
    %99 = vmatprep.subr.mxu0 0.0
    %100 = vmatpush1.msra.mxu0 0.0
    %101 = vmatprep.subr.mxu0 0.0
    %102 = vmatpush1.msra.mxu0 0.0
    %103 = vmatprep.subr.mxu0 0.0
    %104 = vmatpush1.msra.mxu0 0.0
    %105 = vmatprep.subr.mxu0 0.0
    %106 = vmatpush1.msra.mxu0 0.0
    %107 = vmatprep.subr.mxu0 0.0
    %108 = vmatpush1.msra.mxu0 0.0
    %109 = vmatprep.subr.mxu0 0.0
    %110 = vmatpush1.msra.mxu0 0.0
    %111 = vmatprep.subr.mxu0 0.0
    %112 = vmatpush1.msra.mxu0 0.0
    %113 = vmatprep.subr.mxu0 0.0
    %114 = vmatpush1.msra.mxu0 0.0
    %115 = vmatprep.subr.mxu0 0.0
    %116 = vmatpush1.msra.mxu0 %v75
    %117 = vmatprep.subr.mxu0 0.0
    %118 = vmatpush1.msra.mxu0 %v74
    %119 = vmatprep.subr.mxu0 0.0
    %120 = vmatpush2.msra.mxu0 0.0
    %121 = vmatprep.subr.mxu0 0.0
    %122 = vmatpush2.msra.mxu0 0.0
    %123 = vmatprep.subr.mxu0 0.0
    %124 = vmatpush2.msra.mxu0 0.0
    %125 = vmatprep.subr.mxu0 0.0
    %126 = vmatpush2.msra.mxu0 0.0
    %127 = vmatprep.subr.mxu0 0.0
    %128 = vmatpush2.msra.mxu0 0.0
    %129 = vmatprep.subr.mxu0 0.0
    %130 = vmatpush2.msra.mxu0 0.0
    %131 = vmatprep.subr.mxu0 0.0
    %132 = vmatpush2.msra.mxu0 0.0
    %133 = vmatprep.subr.mxu0 0.0
    %134 = vmatpush2.msra.mxu0 0.0
    %135 = vmatprep.subr.mxu0 0.0
    %136 = vmatpush2.msra.mxu0 0.0
    %137 = vmatprep.subr.mxu0 0.0
    %138 = vmatpush2.msra.mxu0 0.0
    %139 = vmatprep.subr.mxu0 0.0
    %140 = vmatpush2.msra.mxu0 0.0
    %141 = vmatprep.subr.mxu0 0.0
    %142 = vmatpush2.msra.mxu0 0.0
    %143 = vmatprep.subr.mxu0 0.0
    %144 = vmatpush2.msra.mxu0 0.0
    %145 = vmatprep.subr.mxu0 0.0
    %146 = vmatpush2.msra.mxu0 0.0
    %147 = vmatprep.subr.mxu0 0.0
    %148 = vmatpush2.msra.mxu0 0.0
    %149 = vmatprep.subr.mxu0 0.0
    %150 = vmatpush2.msra.mxu0 0.0
    %151 = vmatprep.mubr.f32.mxu0 0.0
    %152 = vmatmul.mubr.f32.gmra.mxu0 %v85
    %v153 = vpop.f32.mrf.mxu0
    %v154 = vadd.f32 %v81, %v153
    %v155 = vpop.f32.mrf.mxu0
    %156 = vdwg.mxu0
    %vm157 = vcmp.gt.f32.partialorder %v154, 20.0
    %v158 = vmin.f32 %v154, 20.0
    %v159 = vmul.f32 %v158, 1.442695
    %v160 = vpow.pop %v159
    %v161 = vadd.f32 %v160, 1.0
    %v162 = vlog2.pop %v161
    %v163 = vmul.f32 %v162, 0.6931472
    %v164 = vmul.f32 -0.5, %v160
    %v165 = vadd.f32 %v164, 1.0
    %v166 = vmul.f32 %v165, %v160
    %v167 = vand.u32 2147483647, %v160
    %vm168 = vcmp.lt.f32.partialorder %v167, 0.0004427343
    %v169 = vsel %vm168, %v166, %v163
    %v170 = vsel %vm157, %v154, %v169
    %v171 = vld [vmem:[%s3] sm:$0xff]
    %v172 = vld [vmem:[%s3 + $0x8] sm:$0xff]
    %v173 = vld [vmem:[%s3 + $0x10] sm:$0xff]
    %v174 = vld [vmem:[%s3 + $0x18] sm:$0xff]
    %v175 = vld [vmem:[%s4] sm:$0x1]
    %v177 = vlaneseq
    %v178 = vshrl.u32 %v177, 7
    %v179 = vsub.s32 0, %v178
    %v180 = vrot.slane %v175, %v179
    %vm182 = vcmask 261120
    %v184 = vsel %vm182, %v170, 0
    %186 = vmatprep.subr.mxu0 0.0
    %187 = vmatpush1.msra.mxu0 0.0
    %188 = vmatprep.subr.mxu0 0.0
    %189 = vmatpush1.msra.mxu0 0.0
    %190 = vmatprep.subr.mxu0 0.0
    %191 = vmatpush1.msra.mxu0 0.0
    %192 = vmatprep.subr.mxu0 0.0
    %193 = vmatpush1.msra.mxu0 0.0
    %194 = vmatprep.subr.mxu0 0.0
    %195 = vmatpush1.msra.mxu0 0.0
    %196 = vmatprep.subr.mxu0 0.0
    %197 = vmatpush1.msra.mxu0 0.0
    %198 = vmatprep.subr.mxu0 0.0
    %199 = vmatpush1.msra.mxu0 0.0
    %200 = vmatprep.subr.mxu0 0.0
    %201 = vmatpush1.msra.mxu0 0.0
    %202 = vmatprep.subr.mxu0 0.0
    %203 = vmatpush1.msra.mxu0 0.0
    %204 = vmatprep.subr.mxu0 0.0
    %205 = vmatpush1.msra.mxu0 0.0
    %206 = vmatprep.subr.mxu0 0.0
    %207 = vmatpush1.msra.mxu0 0.0
    %208 = vmatprep.subr.mxu0 0.0
    %209 = vmatpush1.msra.mxu0 0.0
    %210 = vmatprep.subr.mxu0 0.0
    %211 = vmatpush1.msra.mxu0 %v174
    %212 = vmatprep.subr.mxu0 0.0
    %213 = vmatpush1.msra.mxu0 %v173
    %214 = vmatprep.subr.mxu0 0.0
    %215 = vmatpush1.msra.mxu0 %v172
    %216 = vmatprep.subr.mxu0 0.0
    %217 = vmatpush1.msra.mxu0 %v171
    %218 = vmatprep.subr.mxu0 0.0
    %219 = vmatpush2.msra.mxu0 0.0
    %220 = vmatprep.subr.mxu0 0.0
    %221 = vmatpush2.msra.mxu0 0.0
    %222 = vmatprep.subr.mxu0 0.0
    %223 = vmatpush2.msra.mxu0 0.0
    %224 = vmatprep.subr.mxu0 0.0
    %225 = vmatpush2.msra.mxu0 0.0
    %226 = vmatprep.subr.mxu0 0.0
    %227 = vmatpush2.msra.mxu0 0.0
    %228 = vmatprep.subr.mxu0 0.0
    %229 = vmatpush2.msra.mxu0 0.0
    %230 = vmatprep.subr.mxu0 0.0
    %231 = vmatpush2.msra.mxu0 0.0
    %232 = vmatprep.subr.mxu0 0.0
    %233 = vmatpush2.msra.mxu0 0.0
    %234 = vmatprep.subr.mxu0 0.0
    %235 = vmatpush2.msra.mxu0 0.0
    %236 = vmatprep.subr.mxu0 0.0
    %237 = vmatpush2.msra.mxu0 0.0
    %238 = vmatprep.subr.mxu0 0.0
    %239 = vmatpush2.msra.mxu0 0.0
    %240 = vmatprep.subr.mxu0 0.0
    %241 = vmatpush2.msra.mxu0 0.0
    %242 = vmatprep.subr.mxu0 0.0
    %243 = vmatpush2.msra.mxu0 0.0
    %244 = vmatprep.subr.mxu0 0.0
    %245 = vmatpush2.msra.mxu0 0.0
    %246 = vmatprep.subr.mxu0 0.0
    %247 = vmatpush2.msra.mxu0 0.0
    %248 = vmatprep.subr.mxu0 0.0
    %249 = vmatpush2.msra.mxu0 0.0
    %250 = vmatprep.mubr.f32.mxu0 0.0
    %251 = vmatmul.mubr.f32.gmra.mxu0 %v184
    %v252 = vpop.f32.mrf.mxu0
    %v253 = vadd.f32 %v180, %v252
    %v254 = vpop.f32.mrf.mxu0
    %255 = vdwg.mxu0
    %vm256 = vcmp.gt.f32.partialorder %v253, 20.0
    %v257 = vmin.f32 %v253, 20.0
    %v258 = vmul.f32 %v257, 1.442695
    %v259 = vpow.pop %v258
    %v260 = vadd.f32 %v259, 1.0
    %v261 = vlog2.pop %v260
    %v262 = vmul.f32 %v261, 0.6931472
    %v263 = vmul.f32 -0.5, %v259
    %v264 = vadd.f32 %v263, 1.0
    %v265 = vmul.f32 %v264, %v259
    %v266 = vand.u32 2147483647, %v259
    %vm267 = vcmp.lt.f32.partialorder %v266, 0.0004427343
    %v268 = vsel %vm267, %v265, %v262
    %v269 = vsel %vm256, %v253, %v268
    %v270 = vld [vmem:[#allocation7] sm:$0xff]
    %v271 = vld [vmem:[#allocation7 + $0x8] sm:$0xff]
    %v272 = vld [vmem:[#allocation7 + $0x10] sm:$0xff]
    %v273 = vld [vmem:[#allocation7 + $0x18] sm:$0xff]
    %v274 = vld [vmem:[%s6] sm:$0x1]
    %v276 = vlaneseq
    %v277 = vshrl.u32 %v276, 7
    %v278 = vsub.s32 0, %v277
    %v279 = vrot.slane %v274, %v278
    %v282 = vsel %vm182, %v269, 0
    %284 = vmatprep.subr.mxu0 0.0
    %285 = vmatpush1.msra.mxu0 0.0
    %286 = vmatprep.subr.mxu0 0.0
    %287 = vmatpush1.msra.mxu0 0.0
    %288 = vmatprep.subr.mxu0 0.0
    %289 = vmatpush1.msra.mxu0 0.0
    %290 = vmatprep.subr.mxu0 0.0
    %291 = vmatpush1.msra.mxu0 0.0
    %292 = vmatprep.subr.mxu0 0.0
    %293 = vmatpush1.msra.mxu0 0.0
    %294 = vmatprep.subr.mxu0 0.0
    %295 = vmatpush1.msra.mxu0 0.0
    %296 = vmatprep.subr.mxu0 0.0
    %297 = vmatpush1.msra.mxu0 0.0
    %298 = vmatprep.subr.mxu0 0.0
    %299 = vmatpush1.msra.mxu0 0.0
    %300 = vmatprep.subr.mxu0 0.0
    %301 = vmatpush1.msra.mxu0 0.0
    %302 = vmatprep.subr.mxu0 0.0
    %303 = vmatpush1.msra.mxu0 0.0
    %304 = vmatprep.subr.mxu0 0.0
    %305 = vmatpush1.msra.mxu0 0.0
    %306 = vmatprep.subr.mxu0 0.0
    %307 = vmatpush1.msra.mxu0 0.0
    %308 = vmatprep.subr.mxu0 0.0
    %309 = vmatpush1.msra.mxu0 %v273
    %310 = vmatprep.subr.mxu0 0.0
    %311 = vmatpush1.msra.mxu0 %v272
    %312 = vmatprep.subr.mxu0 0.0
    %313 = vmatpush1.msra.mxu0 %v271
    %314 = vmatprep.subr.mxu0 0.0
    %315 = vmatpush1.msra.mxu0 %v270
    %316 = vmatprep.subr.mxu0 0.0
    %317 = vmatpush2.msra.mxu0 0.0
    %318 = vmatprep.subr.mxu0 0.0
    %319 = vmatpush2.msra.mxu0 0.0
    %320 = vmatprep.subr.mxu0 0.0
    %321 = vmatpush2.msra.mxu0 0.0
    %322 = vmatprep.subr.mxu0 0.0
    %323 = vmatpush2.msra.mxu0 0.0
    %324 = vmatprep.subr.mxu0 0.0
    %325 = vmatpush2.msra.mxu0 0.0
    %326 = vmatprep.subr.mxu0 0.0
    %327 = vmatpush2.msra.mxu0 0.0
    %328 = vmatprep.subr.mxu0 0.0
    %329 = vmatpush2.msra.mxu0 0.0
    %330 = vmatprep.subr.mxu0 0.0
    %331 = vmatpush2.msra.mxu0 0.0
    %332 = vmatprep.subr.mxu0 0.0
    %333 = vmatpush2.msra.mxu0 0.0
    %334 = vmatprep.subr.mxu0 0.0
    %335 = vmatpush2.msra.mxu0 0.0
    %336 = vmatprep.subr.mxu0 0.0
    %337 = vmatpush2.msra.mxu0 0.0
    %338 = vmatprep.subr.mxu0 0.0
    %339 = vmatpush2.msra.mxu0 0.0
    %340 = vmatprep.subr.mxu0 0.0
    %341 = vmatpush2.msra.mxu0 0.0
    %342 = vmatprep.subr.mxu0 0.0
    %343 = vmatpush2.msra.mxu0 0.0
    %344 = vmatprep.subr.mxu0 0.0
    %345 = vmatpush2.msra.mxu0 0.0
    %346 = vmatprep.subr.mxu0 0.0
    %347 = vmatpush2.msra.mxu0 0.0
    %348 = vmatprep.mubr.f32.mxu0 0.0
    %349 = vmatmul.mubr.f32.gmra.mxu0 %v282
    %v350 = vpop.f32.mrf.mxu0
    %v351 = vadd.f32 %v279, %v350
    %v352 = vpop.f32.mrf.mxu0
    %353 = vdwg.mxu0
    %vm354 = vcmp.gt.f32.partialorder %v351, 20.0
    %v355 = vmin.f32 %v351, 20.0
    %v356 = vmul.f32 %v355, 1.442695
    %v357 = vpow.pop %v356
    %v358 = vadd.f32 %v357, 1.0
    %v359 = vlog2.pop %v358
    %v360 = vmul.f32 %v359, 0.6931472
    %v361 = vmul.f32 -0.5, %v357
    %v362 = vadd.f32 %v361, 1.0
    %v363 = vmul.f32 %v362, %v357
    %v364 = vand.u32 2147483647, %v357
    %vm365 = vcmp.lt.f32.partialorder %v364, 0.0004427343
    %v366 = vsel %vm365, %v363, %v360
    %v367 = vsel %vm354, %v351, %v366
    %v368 = vld [vmem:[%s7] sm:$0xff]
    %v369 = vld [vmem:[%s7 + $0x8] sm:$0xff]
    %v370 = vld [vmem:[%s7 + $0x10] sm:$0xff]
    %v371 = vld [vmem:[%s7 + $0x18] sm:$0xff]
    %v372 = vld [vmem:[#allocation2] sm:$0x1]
    %v374 = vlaneseq
    %v375 = vshrl.u32 %v374, 7
    %v376 = vsub.s32 0, %v375
    %v377 = vrot.slane %v372, %v376
    %v380 = vsel %vm182, %v367, 0
    %382 = vmatprep.subr.mxu0 0.0
    %383 = vmatpush1.msra.mxu0 0.0
    %384 = vmatprep.subr.mxu0 0.0
    %385 = vmatpush1.msra.mxu0 0.0
    %386 = vmatprep.subr.mxu0 0.0
    %387 = vmatpush1.msra.mxu0 0.0
    %388 = vmatprep.subr.mxu0 0.0
    %389 = vmatpush1.msra.mxu0 0.0
    %390 = vmatprep.subr.mxu0 0.0
    %391 = vmatpush1.msra.mxu0 0.0
    %392 = vmatprep.subr.mxu0 0.0
    %393 = vmatpush1.msra.mxu0 0.0
    %394 = vmatprep.subr.mxu0 0.0
    %395 = vmatpush1.msra.mxu0 0.0
    %396 = vmatprep.subr.mxu0 0.0
    %397 = vmatpush1.msra.mxu0 0.0
    %398 = vmatprep.subr.mxu0 0.0
    %399 = vmatpush1.msra.mxu0 0.0
    %400 = vmatprep.subr.mxu0 0.0
    %401 = vmatpush1.msra.mxu0 0.0
    %402 = vmatprep.subr.mxu0 0.0
    %403 = vmatpush1.msra.mxu0 0.0
    %404 = vmatprep.subr.mxu0 0.0
    %405 = vmatpush1.msra.mxu0 0.0
    %406 = vmatprep.subr.mxu0 0.0
    %407 = vmatpush1.msra.mxu0 %v371
    %408 = vmatprep.subr.mxu0 0.0
    %409 = vmatpush1.msra.mxu0 %v370
    %410 = vmatprep.subr.mxu0 0.0
    %411 = vmatpush1.msra.mxu0 %v369
    %412 = vmatprep.subr.mxu0 0.0
    %413 = vmatpush1.msra.mxu0 %v368
    %414 = vmatprep.subr.mxu0 0.0
    %415 = vmatpush2.msra.mxu0 0.0
    %416 = vmatprep.subr.mxu0 0.0
    %417 = vmatpush2.msra.mxu0 0.0
    %418 = vmatprep.subr.mxu0 0.0
    %419 = vmatpush2.msra.mxu0 0.0
    %420 = vmatprep.subr.mxu0 0.0
    %421 = vmatpush2.msra.mxu0 0.0
    %422 = vmatprep.subr.mxu0 0.0
    %423 = vmatpush2.msra.mxu0 0.0
    %424 = vmatprep.subr.mxu0 0.0
    %425 = vmatpush2.msra.mxu0 0.0
    %426 = vmatprep.subr.mxu0 0.0
    %427 = vmatpush2.msra.mxu0 0.0
    %428 = vmatprep.subr.mxu0 0.0
    %429 = vmatpush2.msra.mxu0 0.0
    %430 = vmatprep.subr.mxu0 0.0
    %431 = vmatpush2.msra.mxu0 0.0
    %432 = vmatprep.subr.mxu0 0.0
    %433 = vmatpush2.msra.mxu0 0.0
    %434 = vmatprep.subr.mxu0 0.0
    %435 = vmatpush2.msra.mxu0 0.0
    %436 = vmatprep.subr.mxu0 0.0
    %437 = vmatpush2.msra.mxu0 0.0
    %438 = vmatprep.subr.mxu0 0.0
    %439 = vmatpush2.msra.mxu0 0.0
    %440 = vmatprep.subr.mxu0 0.0
    %441 = vmatpush2.msra.mxu0 0.0
    %442 = vmatprep.subr.mxu0 0.0
    %443 = vmatpush2.msra.mxu0 0.0
    %444 = vmatprep.subr.mxu0 0.0
    %445 = vmatpush2.msra.mxu0 0.0
    %446 = vmatprep.mubr.f32.mxu0 0.0
    %447 = vmatmul.mubr.f32.gmra.mxu0 %v380
    %v448 = vpop.f32.mrf.mxu0
    %v449 = vadd.f32 %v377, %v448
    %v450 = vpop.f32.mrf.mxu0
    %451 = vdwg.mxu0
    %vm452 = vcmask 7168
    %453 = vst.msk [vmem:[%s9] sm:$0xff] %vm452, %v449
    // Predicated region
    $region50: #{tpu_custom_call.1} parent=1 // pred_check
      _
    $region51: #{tpu_custom_call.1} parent=1 // pred_check_branch
      %455 = sbr.rel (0) target = $region53
    $region52: #{tpu_custom_call.1} parent=1 // pred_region
      _
    $region53: #{tpu_custom_call.1} parent=1 // pred_fallthru
      _
    // Predicated region
    $region54: #{tpu_custom_call.1} parent=1 // pred_check
      _
    $region55: #{tpu_custom_call.1} parent=1 // pred_check_branch
      %457 = sbr.rel (0) target = $region57
    $region56: #{tpu_custom_call.1} parent=1 // pred_region
      _
    $region57: #{tpu_custom_call.1} parent=1 // pred_fallthru
      _
    %458 = vsyncpa [#allocation4], 1
    %459 = vsyncpa [#allocation6], 1

</llo_original>
